<compile_context>
chip_gen: v7x
topology: tpu7x:2x2x1
jax: 0.10.0
libtpu: 0.0.40
codegen_flags: <defaults>
</compile_context>

<pallas_src>
import math
import jax
import jax.numpy as jnp
from jax import lax
from jax.experimental import pallas as pl
from jax.experimental.pallas import tpu as pltpu


def _pick_tile(total, target, multiple=8):
    """Largest divisor of `total` that is a multiple of `multiple` and <= target.
    Falls back to `total` itself (a full-extent block is always legal)."""
    t = min(target, total)
    start = t - (t % multiple)
    for cand in range(start, 0, -multiple):
        if total % cand == 0:
            return cand
    return total


# ---------------------------------------------------------------------------
# Kernel 1: batch-invariant positional encoding  pos_enc[S, D]   (computed once)
# ---------------------------------------------------------------------------
def _pos_enc_kernel(mu_ref, coef_ref, logsig_ref, emb_ref, pe_ref):
    tS, _ = pe_ref.shape
    k = mu_ref.shape[1]

    # positions[i, :] == global row index i (generated in-kernel, no DMA).
    base = pl.program_id(0) * tS
    pos = (base + lax.broadcasted_iota(jnp.int32, (tS, k), 0)).astype(jnp.float32)

    a = pos - mu_ref[...]                               # [tS, k]
    log_p = (a * a) * coef_ref[...] - logsig_ref[...]   # coef = -1/(2*sigma^2)

    # softmax over k (numerically stable form, identical result)
    log_p = log_p - jnp.max(log_p, axis=1, keepdims=True)
    p = jnp.exp(log_p)
    pdfs = p / jnp.sum(p, axis=1, keepdims=True)

    pe_ref[...] = jnp.dot(pdfs, emb_ref[...],
                          preferred_element_type=jnp.float32)


def _compute_pos_enc(mu, sigma, embedding, seq_len):
    k, d_model = embedding.shape
    # Fold per-k constants on the host (removes per-element divide + log).
    coef = (-1.0 / (2.0 * sigma * sigma)).astype(jnp.float32)
    logsig = jnp.log(sigma).astype(jnp.float32)

    tS = _pick_tile(seq_len, target=min(1024, max(8, 262144 // max(d_model, 1))))

    return pl.pallas_call(
        _pos_enc_kernel,
        out_shape=jax.ShapeDtypeStruct((seq_len, d_model), jnp.float32),
        grid_spec=pltpu.PrefetchScalarGridSpec(
            num_scalar_prefetch=0,
            grid=(seq_len // tS,),
            in_specs=[
                pl.BlockSpec((1, k), lambda i: (0, 0)),        # mu
                pl.BlockSpec((1, k), lambda i: (0, 0)),        # -1/(2*sigma^2)
                pl.BlockSpec((1, k), lambda i: (0, 0)),        # log(sigma)
                pl.BlockSpec((k, d_model), lambda i: (0, 0)),  # embedding
            ],
            out_specs=pl.BlockSpec((tS, d_model), lambda i: (i, 0)),
        ),
        compiler_params=pltpu.CompilerParams(
            dimension_semantics=("parallel",)),
    )(mu, coef, logsig, embedding)


# ---------------------------------------------------------------------------
# Kernel 2: memory-bound broadcast add   out[b, r, :] = x[b, r, :] + pe[r, :]
# ---------------------------------------------------------------------------
def _add_pos_enc_kernel(x_ref, pe_ref, o_ref):
    o_ref[...] = (x_ref[...] + pe_ref[...]).astype(o_ref.dtype)


def positional_encoding(inputs, mu, sigma, embedding):
    B, S, D = inputs.shape
    pos_enc = _compute_pos_enc(mu, sigma, embedding, S)      # [S, D] float32

    # Lane-dense layout: make the last dim a multiple of 128 when possible.
    if D % 128 == 0:
        R, L = S, D
        x3 = inputs
        needs_reshape = False
    elif (S * D) % 128 == 0:
        L = 128
        R = (S * D) // L
        x3 = inputs.reshape(B, R, L)
        needs_reshape = True
    else:
        R, L = S, D          # fall back; stores will be lane-masked
        x3 = inputs
        needs_reshape = False
    pe2 = pos_enc.reshape(R, L)

    # VMEM budget: ~1 MiB per block => 2 buffers x 3 operands ~= 6 MiB,
    # comfortably inside v5e's 16 MiB default scoped VMEM (and v6e/v7x).
    tR = _pick_tile(R, target=max(8, 262144 // L))

    itemsize = jnp.dtype(inputs.dtype).itemsize
    cost = pl.CostEstimate(
        flops=B * S * D,                                     # one add per element
        transcendentals=0,
        bytes_accessed=2 * B * S * D * itemsize + S * D * 4,
    )

    out = pl.pallas_call(
        _add_pos_enc_kernel,
        out_shape=jax.ShapeDtypeStruct((B, R, L), inputs.dtype),
        grid_spec=pltpu.PrefetchScalarGridSpec(
            num_scalar_prefetch=0,
            # r outer, b inner: the pos_enc tile is DMA'd once per r-tile,
            # not once per (r, b) step.
            grid=(R // tR, B),
            in_specs=[
                pl.BlockSpec((pl.Squeezed(), tR, L), lambda r, b: (b, r, 0)),  # x
                pl.BlockSpec((tR, L), lambda r, b: (r, 0)),                    # pos_enc
            ],
            out_specs=pl.BlockSpec((pl.Squeezed(), tR, L), lambda r, b: (b, r, 0)),
        ),
        compiler_params=pltpu.CompilerParams(
            dimension_semantics=("parallel", "parallel")),
        cost_estimate=cost,
    )(x3, pe2)

    if needs_reshape:
        out = out.reshape(B, S, D)
    return out


# ---------------------------------------------------------------------------
# Parameter construction (mirrors the PyTorch module) and a pure-JAX reference.
# ---------------------------------------------------------------------------
def make_params(k, d_model, seq_len, key):
    # embedding: xavier_uniform_([k, d_model], gain=1)
    bound = math.sqrt(6.0 / (k + d_model))
    embedding = jax.random.uniform(key, (k, d_model), jnp.float32,
                                   minval=-bound, maxval=bound)
    # positions: [seq_len, k], row i filled with i (only needed by the reference)
    positions = jnp.tile(jnp.arange(seq_len, dtype=jnp.float32)[:, None], (1, k))
    # mu: [1, k] = 0, interval, 2*interval, ...
    interval = seq_len / k
    mu = (jnp.arange(k, dtype=jnp.float32) * interval)[None, :]
    # sigma: [1, k] all 50.0
    sigma = jnp.full((1, k), 50.0, dtype=jnp.float32)
    return positions, mu, sigma, embedding


def reference(inputs, positions, mu, sigma, embedding):
    a = positions - mu
    log_p = -(a * a) / (2.0 * sigma ** 2) - jnp.log(sigma)
    pdfs = jax.nn.softmax(log_p, axis=1)
    pos_enc = pdfs @ embedding
    return inputs + pos_enc[None, :, :]


if __name__ == "__main__":
    B, S, D, K = 2, 8, 32, 4
    key = jax.random.PRNGKey(0)
    k_emb, k_x = jax.random.split(key)

    positions, mu, sigma, embedding = make_params(K, D, S, k_emb)
    x = jax.random.normal(k_x, (B, S, D), dtype=jnp.float32)

    out = positional_encoding(x, mu, sigma, embedding)
    out = jax.block_until_ready(out)

    ref = reference(x, positions, mu, sigma, embedding)
    assert out.shape == (B, S, D)
    assert jnp.allclose(out, ref, atol=1e-5, rtol=1e-5)

    print("KERNEL_OK")
</pallas_src>

<mosaic_0001>
module attributes {stable_mosaic.version = 11 : i64} {
  func.func @_pos_enc_kernel(%arg0: i32, %arg1: memref<1x4xf32, #tpu.memory_space<vmem>>, %arg2: memref<1x4xf32, #tpu.memory_space<vmem>>, %arg3: memref<1x4xf32, #tpu.memory_space<vmem>>, %arg4: memref<4x32xf32, #tpu.memory_space<vmem>>, %arg5: memref<8x32xf32, #tpu.memory_space<vmem>>) attributes {dimension_semantics = [#tpu.dimension_semantics<parallel>], iteration_bounds = array<i64: 1>, scalar_prefetch = 0 : i64, scratch_operands = 0 : i64, tpu.core_type = #tpu.core_type<tc>, window_params = [{pipeline_mode = #tpu.pipeline_mode<synchronous>, transform_indices = @transform_0, window_bounds = array<i64: 1, 4>}, {pipeline_mode = #tpu.pipeline_mode<synchronous>, transform_indices = @transform_1, window_bounds = array<i64: 1, 4>}, {pipeline_mode = #tpu.pipeline_mode<synchronous>, transform_indices = @transform_2, window_bounds = array<i64: 1, 4>}, {pipeline_mode = #tpu.pipeline_mode<synchronous>, transform_indices = @transform_3, window_bounds = array<i64: 4, 32>}, {transform_indices = @transform_4, window_bounds = array<i64: 8, 32>}]} {
    %c8_i32 = arith.constant 8 : i32
    %0 = arith.muli %arg0, %c8_i32 : i32
    %1 = tpu.iota {dimensions = array<i32: 0>} : vector<8x4xi32>
    %2 = vector.broadcast %0 : i32 to vector<8x4xi32>
    %3 = arith.addi %2, %1 : vector<8x4xi32>
    %4 = arith.sitofp %3 : vector<8x4xi32> to vector<8x4xf32>
    %c0 = arith.constant 0 : index
    %c0_0 = arith.constant 0 : index
    %5 = vector.load %arg1[%c0, %c0_0] : memref<1x4xf32, #tpu.memory_space<vmem>>, vector<1x4xf32>
    %6 = vector.broadcast %5 : vector<1x4xf32> to vector<8x4xf32>
    %7 = arith.subf %4, %6 : vector<8x4xf32>
    %8 = arith.mulf %7, %7 : vector<8x4xf32>
    %c0_1 = arith.constant 0 : index
    %c0_2 = arith.constant 0 : index
    %9 = vector.load %arg2[%c0_1, %c0_2] : memref<1x4xf32, #tpu.memory_space<vmem>>, vector<1x4xf32>
    %10 = vector.broadcast %9 : vector<1x4xf32> to vector<8x4xf32>
    %11 = arith.mulf %8, %10 : vector<8x4xf32>
    %c0_3 = arith.constant 0 : index
    %c0_4 = arith.constant 0 : index
    %12 = vector.load %arg3[%c0_3, %c0_4] : memref<1x4xf32, #tpu.memory_space<vmem>>, vector<1x4xf32>
    %13 = vector.broadcast %12 : vector<1x4xf32> to vector<8x4xf32>
    %14 = arith.subf %11, %13 : vector<8x4xf32>
    %cst = arith.constant dense<0xFF800000> : vector<8xf32>
    %15 = vector.multi_reduction <maximumf>, %14, %cst [1] : vector<8x4xf32> to vector<8xf32>
    %16 = vector.shape_cast %15 : vector<8xf32> to vector<8x1xf32>
    %17 = vector.broadcast %16 : vector<8x1xf32> to vector<8x4xf32>
    %18 = arith.subf %14, %17 : vector<8x4xf32>
    %19 = math.exp %18 : vector<8x4xf32>
    %cst_5 = arith.constant dense<0.000000e+00> : vector<8xf32>
    %20 = vector.multi_reduction <add>, %19, %cst_5 [1] : vector<8x4xf32> to vector<8xf32>
    %21 = vector.shape_cast %20 : vector<8xf32> to vector<8x1xf32>
    %22 = vector.broadcast %21 : vector<8x1xf32> to vector<8x4xf32>
    %23 = arith.divf %19, %22 : vector<8x4xf32>
    %c0_6 = arith.constant 0 : index
    %c0_7 = arith.constant 0 : index
    %24 = vector.load %arg4[%c0_6, %c0_7] : memref<4x32xf32, #tpu.memory_space<vmem>>, vector<4x32xf32>
    %cst_8 = arith.constant dense<0.000000e+00> : vector<8x32xf32>
    %25 = tpu.matmul %23, %24, %cst_8 {dimension_numbers = #tpu.dot_dimension_numbers<[1], [0], [0], [1], [0, 0, 1, 1], [], []>} : vector<8x4xf32>, vector<4x32xf32>, vector<8x32xf32> -> vector<8x32xf32>
    %c0_9 = arith.constant 0 : index
    %c0_10 = arith.constant 0 : index
    %26 = vector.load %arg5[%c0_9, %c0_10] : memref<8x32xf32, #tpu.memory_space<vmem>>, vector<8x32xf32>
    tpu.vector_store %arg5[%c0_9, %c0_10], %25 {strides = array<i32>} : memref<8x32xf32, #tpu.memory_space<vmem>>, vector<8x32xf32>,
    return
  }
  func.func @transform_0(%arg0: i32) -> (i32, i32) {
    %c0_i32 = arith.constant 0 : i32
    %c0_i32_0 = arith.constant 0 : i32
    %c0_i32_1 = arith.constant 0 : i32
    return %c0_i32, %c0_i32_0 : i32, i32
  }
  func.func @transform_1(%arg0: i32) -> (i32, i32) {
    %c0_i32 = arith.constant 0 : i32
    %c0_i32_0 = arith.constant 0 : i32
    %c0_i32_1 = arith.constant 0 : i32
    return %c0_i32, %c0_i32_0 : i32, i32
  }
  func.func @transform_2(%arg0: i32) -> (i32, i32) {
    %c0_i32 = arith.constant 0 : i32
    %c0_i32_0 = arith.constant 0 : i32
    %c0_i32_1 = arith.constant 0 : i32
    return %c0_i32, %c0_i32_0 : i32, i32
  }
  func.func @transform_3(%arg0: i32) -> (i32, i32) {
    %c0_i32 = arith.constant 0 : i32
    %c0_i32_0 = arith.constant 0 : i32
    %c0_i32_1 = arith.constant 0 : i32
    return %c0_i32, %c0_i32_0 : i32, i32
  }
  func.func @transform_4(%arg0: i32) -> (i32, i32) {
    %c0_i32 = arith.constant 0 : i32
    %c0_i32_0 = arith.constant 0 : i32
    return %arg0, %c0_i32 : i32, i32
  }
}

</mosaic_0001>

<llo_original>
// kernel: tpu_custom_call.1
$region0: #{tpu_custom_call.1}
  #allocation0 [shape = 'u32[]', space=smem, size = 0x4, offset = 0x4, fixed_abs, tag = 'smem constant byte address 0x4 - core index']
  #allocation1 [shape = 'u32[144,128]{1,0:T(1,128)}', space=vmem, size = 0x12000, scoped, tag = 'internal scratch']
  %s0 = inlined_call_operand.hbm [shape: f32[1,4], index: 0, kind: input, shape index: {}]
  %s1 = inlined_call_operand.vmem [shape: f32[1,4], index: 1, kind: input, shape index: {}]
  %s2 = inlined_call_operand.vmem [shape: f32[1,4], index: 2, kind: input, shape index: {}]
  %s3 = inlined_call_operand.vmem [shape: f32[4,32], index: 3, kind: input, shape index: {}]
  %s4 = inlined_call_operand.hbm [shape: f32[8,32], index: 4, kind: output, shape index: {}]
  %s5 = sld [smem:[#allocation0]]
  $region30: #{tpu_custom_call.1} parent=0
    _
  %s7 = ssub.s32 1, %s5
  %s8 = scalar_select 0, %s7, %s5
  $region1: #{tpu_custom_call.1} parent=0
    #allocation2 [shape = 'u8[512]{0}', space=vmem, size = 0x400, scoped, tag = 'input window, operand 0, single buffered']
    #allocation3 [shape = 's32[1]{0}', space=sflag, size = 0x4, scoped, tag = 'scoped memory for tpu_custom_call.1']
    #allocation4 [shape = 's32[1]{0}', space=sflag, size = 0x4, scoped, tag = 'scoped memory for tpu_custom_call.1']
    #allocation5 [shape = 'u8[4096]{0}', space=vmem, size = 0x1000, scoped, tag = 'output window, operand 0, single buffered']
    %9 = vsyncpa [#allocation3], 0
    %10 = vsyncpa [#allocation4], 0
    // Predicated region
    $region2: #{tpu_custom_call.1} parent=1 // pred_check
      _
    $region3: #{tpu_custom_call.1} parent=1 // pred_check_branch
      %12 = sbr.rel (0) target = $region5
    $region4: #{tpu_custom_call.1} parent=1 // pred_region
      %s14 = ssub.s32 16, 16
      %15 = vsyncadd [#allocation3], %s14
      %s17 = sshll.u32 [#allocation2], 4
      %s18 = int_to_ptr.vmem [resolvable:$true] %s17
      %20 = dma.hbm_to_vmem [thread:$0]  %s0, 16, %s18, [#allocation3]
    $region5: #{tpu_custom_call.1} parent=1 // pred_fallthru
      _
    // Predicated region
    $region6: #{tpu_custom_call.1} parent=1 // pred_check
      _
    $region7: #{tpu_custom_call.1} parent=1 // pred_check_branch
      %22 = sbr.rel (0) target = $region9
    $region8: #{tpu_custom_call.1} parent=1 // pred_region
      _
    $region9: #{tpu_custom_call.1} parent=1 // pred_fallthru
      _
    // Predicated region
    $region10: #{tpu_custom_call.1} parent=1 // pred_check
      _
    $region11: #{tpu_custom_call.1} parent=1 // pred_check_branch
      %24 = sbr.rel (0) target = $region13
    $region12: #{tpu_custom_call.1} parent=1 // pred_region
      _
    $region13: #{tpu_custom_call.1} parent=1 // pred_fallthru
      _
    // Predicated region
    $region14: #{tpu_custom_call.1} parent=1 // pred_check
      _
    $region15: #{tpu_custom_call.1} parent=1 // pred_check_branch
      %26 = sbr.rel (0) target = $region17
    $region16: #{tpu_custom_call.1} parent=1 // pred_region
      _
    $region17: #{tpu_custom_call.1} parent=1 // pred_fallthru
      _
    // Predicated region
    $region18: #{tpu_custom_call.1} parent=1 // pred_check
      _
    $region19: #{tpu_custom_call.1} parent=1 // pred_check_branch
      %28 = sbr.rel (0) target = $region21
    $region20: #{tpu_custom_call.1} parent=1 // pred_region
      %29 = dma.done [#allocation3], 16
    $region21: #{tpu_custom_call.1} parent=1 // pred_fallthru
      _
    %s30 = smul.u32 0, 8
    %v31 = vlaneseq
    %v32 = vshrl.u32 %v31, 7
    %v33 = vstv %s30
    %v34 = vadd.s32 %v33, %v32
    %v35 = vcvt.s32.f32 %v34
    %v36 = vld [vmem:[#allocation2] sm:$0x1]
    %v38 = vlaneseq
    %v39 = vshrl.u32 %v38, 7
    %v40 = vsub.s32 0, %v39
    %v41 = vrot.slane %v36, %v40
    %v43 = vsub.f32 %v35, %v41
    %v44 = vmul.f32 %v43, %v43
    %v45 = vld [vmem:[%s1] sm:$0x1]
    %v47 = vlaneseq
    %v48 = vshrl.u32 %v47, 7
    %v49 = vsub.s32 0, %v48
    %v50 = vrot.slane %v45, %v49
    %v52 = vmul.f32 %v44, %v50
    %v53 = vld [vmem:[%s2] sm:$0x1]
    %v55 = vlaneseq
    %v56 = vshrl.u32 %v55, 7
    %v57 = vsub.s32 0, %v56
    %v58 = vrot.slane %v53, %v57
    %v60 = vsub.f32 %v52, %v58
    %vm61 = vcmask 31744
    %v62 = vsel %vm61, %v60, -inf
    %63 = vmax.xlane.f32.xlu0 %v62
    %v64 = vpop.xlane.xlu0 %63
    %v65 = vsub.f32 %v60, %v64
    %v66 = vmul.f32 %v65, 1.442695
    %v67 = vpow.pop %v66
    %v68 = vsel %vm61, %v67, 0.0
    %69 = vadd.xlane.f32.xlu0 %v68
    %v70 = vpop.xlane.xlu0 %69
    %v71 = vrcp.pop %v70
    %v72 = vmul.f32 %v67, %v71
    %v73 = vld [vmem:[%s3] sm:$0xf]
    %v75 = vsel %vm61, %v72, 0
    %vm77 = vcmask 1043456
    %v79 = vsel %vm77, %v73, 0
    %81 = vmatprep.subr.mxu0 0.0
    %82 = vmatpush1.msra.mxu0 %v79
    %83 = vmatprep.subr.mxu0 0.0
    %84 = vmatpush1.msra.mxu0 0.0
    %85 = vmatprep.subr.mxu0 0.0
    %86 = vmatpush1.msra.mxu0 0.0
    %87 = vmatprep.subr.mxu0 0.0
    %88 = vmatpush1.msra.mxu0 0.0
    %89 = vmatprep.subr.mxu0 0.0
    %90 = vmatpush1.msra.mxu0 0.0
    %91 = vmatprep.subr.mxu0 0.0
    %92 = vmatpush1.msra.mxu0 0.0
    %93 = vmatprep.subr.mxu0 0.0
    %94 = vmatpush1.msra.mxu0 0.0
    %95 = vmatprep.subr.mxu0 0.0
    %96 = vmatpush1.msra.mxu0 0.0
    %97 = vmatprep.subr.mxu0 0.0
    %98 = vmatpush1.msra.mxu0 0.0
    %99 = vmatprep.subr.mxu0 0.0
    %100 = vmatpush1.msra.mxu0 0.0
    %101 = vmatprep.subr.mxu0 0.0
    %102 = vmatpush1.msra.mxu0 0.0
    %103 = vmatprep.subr.mxu0 0.0
    %104 = vmatpush1.msra.mxu0 0.0
    %105 = vmatprep.subr.mxu0 0.0
    %106 = vmatpush1.msra.mxu0 0.0
    %107 = vmatprep.subr.mxu0 0.0
    %108 = vmatpush1.msra.mxu0 0.0
    %109 = vmatprep.subr.mxu0 0.0
    %110 = vmatpush1.msra.mxu0 0.0
    %111 = vmatprep.subr.mxu0 0.0
    %112 = vmatpush1.msra.mxu0 0.0
    %113 = vmatprep.subr.mxu0 0.0
    %114 = vmatpush1.msra.mxu0 0.0
    %115 = vmatprep.subr.mxu0 0.0
    %116 = vmatpush1.msra.mxu0 0.0
    %117 = vmatprep.subr.mxu0 0.0
    %118 = vmatpush1.msra.mxu0 0.0
    %119 = vmatprep.subr.mxu0 0.0
    %120 = vmatpush1.msra.mxu0 0.0
    %121 = vmatprep.subr.mxu0 0.0
    %122 = vmatpush1.msra.mxu0 0.0
    %123 = vmatprep.subr.mxu0 0.0
    %124 = vmatpush1.msra.mxu0 0.0
    %125 = vmatprep.subr.mxu0 0.0
    %126 = vmatpush1.msra.mxu0 0.0
    %127 = vmatprep.subr.mxu0 0.0
    %128 = vmatpush1.msra.mxu0 0.0
    %129 = vmatprep.subr.mxu0 0.0
    %130 = vmatpush1.msra.mxu0 0.0
    %131 = vmatprep.subr.mxu0 0.0
    %132 = vmatpush1.msra.mxu0 0.0
    %133 = vmatprep.subr.mxu0 0.0
    %134 = vmatpush1.msra.mxu0 0.0
    %135 = vmatprep.subr.mxu0 0.0
    %136 = vmatpush1.msra.mxu0 0.0
    %137 = vmatprep.subr.mxu0 0.0
    %138 = vmatpush1.msra.mxu0 0.0
    %139 = vmatprep.subr.mxu0 0.0
    %140 = vmatpush1.msra.mxu0 0.0
    %141 = vmatprep.subr.mxu0 0.0
    %142 = vmatpush1.msra.mxu0 0.0
    %143 = vmatprep.subr.mxu0 0.0
    %144 = vmatpush1.msra.mxu0 0.0
    %145 = vmatprep.mubr.f32.mxu0 0.0
    %146 = vmatmul.mubr.f32.gmra.mrb[0].mxu0 %v75
    %v147 = vpop.f32.mrb[0].mxu0
    %v148 = vadd.f32 0.0, %v147
    %v149 = vpop.f32.mrb[0].mxu0
    %150 = vdwg.mxu0
    %vm151 = vcmask 261120
    %152 = vst.msk [vmem:[#allocation5] sm:$0xff] %vm151, %v148
    // Predicated region
    $region22: #{tpu_custom_call.1} parent=1 // pred_check
      _
    $region23: #{tpu_custom_call.1} parent=1 // pred_check_branch
      %154 = sbr.rel (0) target = $region25
    $region24: #{tpu_custom_call.1} parent=1 // pred_region
      %s156 = ssub.s32 128, 128
      %157 = vsyncadd [#allocation4], %s156
      %s159 = sshll.u32 [#allocation5], 4
      %s160 = int_to_ptr.vmem [resolvable:$true] %s159
      %162 = dma.vmem_to_hbm [thread:$0]  %s160, 128, %s4, [#allocation4]
    $region25: #{tpu_custom_call.1} parent=1 // pred_fallthru
      _
    // Predicated region
    $region26: #{tpu_custom_call.1} parent=1 // pred_check
      _
    $region27: #{tpu_custom_call.1} parent=1 // pred_check_branch
      %164 = sbr.rel (0) target = $region29
    $region28: #{tpu_custom_call.1} parent=1 // pred_region
      %165 = dma.done [#allocation4], 128
    $region29: #{tpu_custom_call.1} parent=1 // pred_fallthru
      _
    %166 = vsyncpa [#allocation3], 1
    %167 = vsyncpa [#allocation4], 1

</llo_original>
